<compile_context>
chip_gen: v7x
topology: tpu7x:2x2x1
jax: 0.10.0
libtpu: 0.0.40
codegen_flags: <defaults>
</compile_context>

<pallas_src>
import functools

import numpy as np
import jax
import jax.numpy as jnp
from jax.experimental import pallas as pl
from jax.experimental.pallas import tpu as pltpu


N_LAYERS = 6          # 6 Linear layers per MLP conditioner
LEAK = 0.2            # LeakyReLU negative slope


# ----------------------------------------------------------------------------
# Kernel (feature-major / batch-on-lanes layout)
# ----------------------------------------------------------------------------
def affine_half_flow_kernel(half, parity, n_chains, *refs):
    """refs = x0^T, x1^T, n_chains*6 transposed weights, n_chains*6 biases,
    z^T out, log_det out.

    All activations are (features, batch_tile): features on sublanes, batch on
    lanes, so elementwise work and stores are lane-dense.
    """
    nw = N_LAYERS * n_chains
    x0_ref, x1_ref = refs[0], refs[1]
    w_refs = refs[2:2 + nw]
    b_refs = refs[2 + nw:2 + 2 * nw]
    z_ref, ld_ref = refs[2 + 2 * nw], refs[3 + 2 * nw]

    x0 = x0_ref[...].astype(jnp.float32)        # (half, bt)
    x1 = x1_ref[...].astype(jnp.float32)        # (half, bt)

    def mlp_chain(ws, bs):
        h = x0
        for i in range(N_LAYERS):
            w = ws[i][...]                      # (out, in) transposed weight
            # MXU: M=out, K=in, N=bt; f32 accumulate.  Casting h to the weight
            # dtype lets bf16 weights run the MXU at native bf16 rate.
            h = jnp.dot(w, h.astype(w.dtype),
                        preferred_element_type=jnp.float32)
            h = h + b_refs[0][...].astype(jnp.float32) * 0.0 if False else \
                h + bs[i][...].astype(jnp.float32)      # (out, 1) lane-broadcast
            if i < N_LAYERS - 1:
                h = jnp.maximum(h, LEAK * h)            # LeakyReLU(0.2)
        return h

    if n_chains == 1:                           # fused s|t block-diagonal chain
        st = mlp_chain(w_refs, b_refs)          # (2*half, bt)
        s, t = st[:half, :], st[half:, :]
    else:                                       # separate s and t chains
        s = mlp_chain(w_refs[:N_LAYERS], b_refs[:N_LAYERS])
        t = mlp_chain(w_refs[N_LAYERS:], b_refs[N_LAYERS:])

    z1 = jnp.exp(s) * x1 + t                    # EUP exp + VPU fma, lane-dense

    # z^T = [z0; z1] stacked along sublanes (the module concatenates the halves,
    # it does not re-interleave).  Two static slice stores, no concat temp.
    z0 = x0
    if parity:
        z0, z1 = z1, z0
    z_ref[:half, :] = z0.astype(z_ref.dtype)
    z_ref[half:, :] = z1.astype(z_ref.dtype)

    # log_det: sublane reduce of s -> lane-dense (1, bt) row.
    ld_ref[...] = jnp.sum(s, axis=0, keepdims=True).astype(ld_ref.dtype)


# ----------------------------------------------------------------------------
# Parameter prep (done once in the wrapper; pre-fuse offline in production)
# ----------------------------------------------------------------------------
def _transpose_params(params, param_dtype):
    """(W (in,out), b (1,out)) -> (W^T (out,in) in param_dtype, b (out,1) f32)."""
    out = []
    for w, b in params:
        out.append((jnp.asarray(w, param_dtype).T,
                    jnp.asarray(b, jnp.float32).reshape(-1, 1)))
    return out


def _fuse_conditioner_params_t(s_params_t, t_params_t):
    """Fuse transposed s/t params into one matmul chain.

    Layer 0: shared input -> stack along output (sublane) dim.
    Layers 1..5: block-diagonal.  Biases: stack along output dim.
    """
    fused = []
    for i, ((ws, bs), (wt, bt_)) in enumerate(zip(s_params_t, t_params_t)):
        if i == 0:
            w = jnp.concatenate([ws, wt], axis=0)                  # (2out, in)
        else:
            ztr = jnp.zeros((ws.shape[0], wt.shape[1]), ws.dtype)
            zbl = jnp.zeros((wt.shape[0], ws.shape[1]), wt.dtype)
            w = jnp.concatenate(
                [jnp.concatenate([ws, ztr], axis=1),
                 jnp.concatenate([zbl, wt], axis=1)], axis=0)      # (2out, 2in)
        b = jnp.concatenate([bs, bt_], axis=0)                     # (2out, 1)
        fused.append((w, b))
    return fused


def _default_batch_tile(B, half, nh):
    """Largest lane tile keeping double-buffered I/O + live activations under a
    ~40 MiB budget (v7x has 64 MiB VMEM), with >= 2 grid steps when B >= 256 so
    both v7x TensorCores get work (no-op on single-TC v5e/v6e)."""
    dim = 2 * half
    # f32 bytes per batch column: double-buffered x0/x1/z/log_det tiles plus
    # ~2 live (2*nh)-wide activation layers.
    per_col = 4 * (2 * (2 * half + dim + 1) + 2 * (2 * nh))
    cap = max(128, min(8192, (40 * 1024 * 1024 // per_col) // 128 * 128))
    if B < 256:
        return B
    return min(cap, ((pl.cdiv(B, 2) + 127) // 128) * 128)


# ----------------------------------------------------------------------------
# Wrapper
# ----------------------------------------------------------------------------
def affine_half_flow_pallas(x, s_params, t_params, parity, *,
                            batch_tile=None, fuse_conditioners=None,
                            param_dtype=jnp.float32):
    """Forward pass of AffineHalfFlow: returns (z, log_det) like the module.

    x: (B, dim).  s_params / t_params: lists of 6 (W, b) with W: (in, out),
    b: (1, out).
    """
    B, dim = x.shape
    half = dim // 2
    nh = s_params[0][0].shape[1]

    # Even/odd column split (parity decides which half conditions the other).
    x0 = x[:, ::2]
    x1 = x[:, 1::2]
    if parity:
        x0, x1 = x1, x0
    x0t = x0.T                                   # (half, B) — batch on lanes
    x1t = x1.T

    s_t = _transpose_params(s_params, param_dtype)
    t_t = _transpose_params(t_params, param_dtype)

    if fuse_conditioners is None:
        # Fusion is free only while 2*nh fits one MXU tile (256 on v6e/v7x).
        # TODO(synk): use a 128 threshold on v5e (128-wide MXU).
        fuse_conditioners = (2 * nh) <= 256
    if fuse_conditioners:
        fused = _fuse_conditioner_params_t(s_t, t_t)
        n_chains = 1
    else:
        fused = list(s_t) + list(t_t)
        n_chains = 2
    fw = [w for w, _ in fused]
    fb = [b for _, b in fused]

    if batch_tile is None:
        batch_tile = _default_batch_tile(B, half, nh)
    bt = batch_tile
    grid = (pl.cdiv(B, bt),)

    in_specs = [
        pl.BlockSpec((half, bt), lambda i: (0, i)),   # x0^T lane tile
        pl.BlockSpec((half, bt), lambda i: (0, i)),   # x1^T lane tile
    ]
    # Weights/biases: full-array blocks, constant index maps -> fetched once,
    # VMEM-resident across all batch tiles.
    in_specs += [pl.BlockSpec(w.shape, lambda i: (0, 0)) for w in fw]
    in_specs += [pl.BlockSpec(b.shape, lambda i: (0, 0)) for b in fb]

    out_specs = (
        pl.BlockSpec((dim, bt), lambda i: (0, i)),    # z^T tile, lane-dense
        pl.BlockSpec((1, bt), lambda i: (0, i)),      # log_det row, lane-dense
    )

    zt, ldt = pl.pallas_call(
        functools.partial(affine_half_flow_kernel, half, bool(parity), n_chains),
        out_shape=(
            jax.ShapeDtypeStruct((dim, B), x.dtype),
            jax.ShapeDtypeStruct((1, B), jnp.float32),
        ),
        grid=grid,
        in_specs=in_specs,
        out_specs=out_specs,
        compiler_params=pltpu.CompilerParams(
            dimension_semantics=("parallel",),        # megacore-shard batch axis
            vmem_limit_bytes=48 * 1024 * 1024,        # headroom under v7x 64 MiB
        ),
    )(x0t, x1t, *fw, *fb)

    # TODO(synk): keep z transposed between stacked coupling layers; this
    # transpose is only needed at the stack boundary.
    return zt.T, ldt[0]


# ----------------------------------------------------------------------------
# Reference (pure JAX) + deterministic init
# ----------------------------------------------------------------------------
def init_mlp_params(key, nin, nout, nh):
    dims = [(nin, nh), (nh, nh), (nh, nh), (nh, nh), (nh, nh), (nh, nout)]
    params = []
    for (d_in, d_out) in dims:
        key, kw, kb = jax.random.split(key, 3)
        bound = 1.0 / np.sqrt(d_in)
        w = jax.random.uniform(kw, (d_in, d_out), jnp.float32, -bound, bound)
        b = jax.random.uniform(kb, (1, d_out), jnp.float32, -bound, bound)
        params.append((w, b))
    return params, key


def mlp_ref(x, params):
    h = x
    for i, (w, b) in enumerate(params):
        h = h @ w + b
        if i < len(params) - 1:
            h = jnp.where(h > 0, h, LEAK * h)
    return h


def affine_half_flow_ref(x, s_params, t_params, parity):
    x0, x1 = x[:, ::2], x[:, 1::2]
    if parity:
        x0, x1 = x1, x0
    s = mlp_ref(x0, s_params)
    t = mlp_ref(x0, t_params)
    z0 = x0
    z1 = jnp.exp(s) * x1 + t
    if parity:
        z0, z1 = z1, z0
    z = jnp.concatenate([z0, z1], axis=1)
    log_det = jnp.sum(s, axis=1)
    return z, log_det


if __name__ == "__main__":
    dim, nh = 16, 32
    key = jax.random.PRNGKey(0)
    s_params, key = init_mlp_params(key, dim // 2, dim // 2, nh)
    t_params, key = init_mlp_params(key, dim // 2, dim // 2, nh)

    def check(B, parity, fuse):
        kx = jax.random.fold_in(jax.random.PRNGKey(0), 17 * B + parity)
        x = jax.random.normal(kx, (B, dim), jnp.float32)
        z, log_det = affine_half_flow_pallas(
            x, s_params, t_params, parity, fuse_conditioners=fuse)
        jax.block_until_ready((z, log_det))
        z_ref, ld_ref = affine_half_flow_ref(x, s_params, t_params, parity)
        assert z.shape == (B, dim) and log_det.shape == (B,)
        assert np.allclose(np.asarray(z), np.asarray(z_ref),
                           rtol=2e-4, atol=2e-4), \
            f"z mismatch (B={B}, parity={parity}, fuse={fuse})"
        assert np.allclose(np.asarray(log_det), np.asarray(ld_ref),
                           rtol=2e-4, atol=2e-4), \
            f"log_det mismatch (B={B}, parity={parity}, fuse={fuse})"

    check(B=2, parity=0, fuse=None)      # fused chain, single tile
    check(B=2, parity=1, fuse=None)      # parity swap
    check(B=2, parity=0, fuse=False)     # separate s/t chains (v5e large-nh path)
    check(B=512, parity=1, fuse=None)    # multi-tile grid (2 lane tiles of 256)

    print("KERNEL_OK")
</pallas_src>

<mosaic_0001>
module attributes {stable_mosaic.version = 11 : i64} {
  func.func @affine_half_flow_kernel(%arg0: i32, %arg1: memref<8x2xf32, #tpu.memory_space<vmem>>, %arg2: memref<8x2xf32, #tpu.memory_space<vmem>>, %arg3: memref<64x8xf32, #tpu.memory_space<vmem>>, %arg4: memref<64x64xf32, #tpu.memory_space<vmem>>, %arg5: memref<64x64xf32, #tpu.memory_space<vmem>>, %arg6: memref<64x64xf32, #tpu.memory_space<vmem>>, %arg7: memref<64x64xf32, #tpu.memory_space<vmem>>, %arg8: memref<16x64xf32, #tpu.memory_space<vmem>>, %arg9: memref<64x1xf32, #tpu.memory_space<vmem>>, %arg10: memref<64x1xf32, #tpu.memory_space<vmem>>, %arg11: memref<64x1xf32, #tpu.memory_space<vmem>>, %arg12: memref<64x1xf32, #tpu.memory_space<vmem>>, %arg13: memref<64x1xf32, #tpu.memory_space<vmem>>, %arg14: memref<16x1xf32, #tpu.memory_space<vmem>>, %arg15: memref<16x2xf32, #tpu.memory_space<vmem>>, %arg16: memref<1x2xf32, #tpu.memory_space<vmem>>) attributes {dimension_semantics = [#tpu.dimension_semantics<parallel>], iteration_bounds = array<i64: 1>, scalar_prefetch = 0 : i64, scratch_operands = 0 : i64, tpu.core_type = #tpu.core_type<tc>, window_params = [{transform_indices = @transform_0, window_bounds = array<i64: 8, 2>}, {transform_indices = @transform_1, window_bounds = array<i64: 8, 2>}, {pipeline_mode = #tpu.pipeline_mode<synchronous>, transform_indices = @transform_2, window_bounds = array<i64: 64, 8>}, {pipeline_mode = #tpu.pipeline_mode<synchronous>, transform_indices = @transform_3, window_bounds = array<i64: 64, 64>}, {pipeline_mode = #tpu.pipeline_mode<synchronous>, transform_indices = @transform_4, window_bounds = array<i64: 64, 64>}, {pipeline_mode = #tpu.pipeline_mode<synchronous>, transform_indices = @transform_5, window_bounds = array<i64: 64, 64>}, {pipeline_mode = #tpu.pipeline_mode<synchronous>, transform_indices = @transform_6, window_bounds = array<i64: 64, 64>}, {pipeline_mode = #tpu.pipeline_mode<synchronous>, transform_indices = @transform_7, window_bounds = array<i64: 16, 64>}, {pipeline_mode = #tpu.pipeline_mode<synchronous>, transform_indices = @transform_8, window_bounds = array<i64: 64, 1>}, {pipeline_mode = #tpu.pipeline_mode<synchronous>, transform_indices = @transform_9, window_bounds = array<i64: 64, 1>}, {pipeline_mode = #tpu.pipeline_mode<synchronous>, transform_indices = @transform_10, window_bounds = array<i64: 64, 1>}, {pipeline_mode = #tpu.pipeline_mode<synchronous>, transform_indices = @transform_11, window_bounds = array<i64: 64, 1>}, {pipeline_mode = #tpu.pipeline_mode<synchronous>, transform_indices = @transform_12, window_bounds = array<i64: 64, 1>}, {pipeline_mode = #tpu.pipeline_mode<synchronous>, transform_indices = @transform_13, window_bounds = array<i64: 16, 1>}, {transform_indices = @transform_14, window_bounds = array<i64: 16, 2>}, {transform_indices = @transform_15, window_bounds = array<i64: 1, 2>}]} {
    %c0 = arith.constant 0 : index
    %c0_0 = arith.constant 0 : index
    %0 = vector.load %arg1[%c0, %c0_0] : memref<8x2xf32, #tpu.memory_space<vmem>>, vector<8x2xf32>
    %c0_1 = arith.constant 0 : index
    %c0_2 = arith.constant 0 : index
    %1 = vector.load %arg2[%c0_1, %c0_2] : memref<8x2xf32, #tpu.memory_space<vmem>>, vector<8x2xf32>
    %c0_3 = arith.constant 0 : index
    %c0_4 = arith.constant 0 : index
    %2 = vector.load %arg3[%c0_3, %c0_4] : memref<64x8xf32, #tpu.memory_space<vmem>>, vector<64x8xf32>
    %cst = arith.constant dense<0.000000e+00> : vector<64x2xf32>
    %3 = tpu.matmul %2, %0, %cst {dimension_numbers = #tpu.dot_dimension_numbers<[1], [0], [0], [1], [0, 0, 1, 1], [], []>} : vector<64x8xf32>, vector<8x2xf32>, vector<64x2xf32> -> vector<64x2xf32>
    %c0_5 = arith.constant 0 : index
    %c0_6 = arith.constant 0 : index
    %4 = vector.load %arg9[%c0_5, %c0_6] : memref<64x1xf32, #tpu.memory_space<vmem>>, vector<64x1xf32>
    %5 = vector.broadcast %4 : vector<64x1xf32> to vector<64x2xf32>
    %6 = arith.addf %3, %5 : vector<64x2xf32>
    %cst_7 = arith.constant 2.000000e-01 : f32
    %7 = vector.broadcast %cst_7 : f32 to vector<64x2xf32>
    %8 = arith.mulf %7, %6 : vector<64x2xf32>
    %9 = arith.maximumf %6, %8 : vector<64x2xf32>
    %c0_8 = arith.constant 0 : index
    %c0_9 = arith.constant 0 : index
    %10 = vector.load %arg4[%c0_8, %c0_9] : memref<64x64xf32, #tpu.memory_space<vmem>>, vector<64x64xf32>
    %cst_10 = arith.constant dense<0.000000e+00> : vector<64x2xf32>
    %11 = tpu.matmul %10, %9, %cst_10 {dimension_numbers = #tpu.dot_dimension_numbers<[1], [0], [0], [1], [0, 0, 1, 1], [], []>} : vector<64x64xf32>, vector<64x2xf32>, vector<64x2xf32> -> vector<64x2xf32>
    %c0_11 = arith.constant 0 : index
    %c0_12 = arith.constant 0 : index
    %12 = vector.load %arg10[%c0_11, %c0_12] : memref<64x1xf32, #tpu.memory_space<vmem>>, vector<64x1xf32>
    %13 = vector.broadcast %12 : vector<64x1xf32> to vector<64x2xf32>
    %14 = arith.addf %11, %13 : vector<64x2xf32>
    %cst_13 = arith.constant 2.000000e-01 : f32
    %15 = vector.broadcast %cst_13 : f32 to vector<64x2xf32>
    %16 = arith.mulf %15, %14 : vector<64x2xf32>
    %17 = arith.maximumf %14, %16 : vector<64x2xf32>
    %c0_14 = arith.constant 0 : index
    %c0_15 = arith.constant 0 : index
    %18 = vector.load %arg5[%c0_14, %c0_15] : memref<64x64xf32, #tpu.memory_space<vmem>>, vector<64x64xf32>
    %cst_16 = arith.constant dense<0.000000e+00> : vector<64x2xf32>
    %19 = tpu.matmul %18, %17, %cst_16 {dimension_numbers = #tpu.dot_dimension_numbers<[1], [0], [0], [1], [0, 0, 1, 1], [], []>} : vector<64x64xf32>, vector<64x2xf32>, vector<64x2xf32> -> vector<64x2xf32>
    %c0_17 = arith.constant 0 : index
    %c0_18 = arith.constant 0 : index
    %20 = vector.load %arg11[%c0_17, %c0_18] : memref<64x1xf32, #tpu.memory_space<vmem>>, vector<64x1xf32>
    %21 = vector.broadcast %20 : vector<64x1xf32> to vector<64x2xf32>
    %22 = arith.addf %19, %21 : vector<64x2xf32>
    %cst_19 = arith.constant 2.000000e-01 : f32
    %23 = vector.broadcast %cst_19 : f32 to vector<64x2xf32>
    %24 = arith.mulf %23, %22 : vector<64x2xf32>
    %25 = arith.maximumf %22, %24 : vector<64x2xf32>
    %c0_20 = arith.constant 0 : index
    %c0_21 = arith.constant 0 : index
    %26 = vector.load %arg6[%c0_20, %c0_21] : memref<64x64xf32, #tpu.memory_space<vmem>>, vector<64x64xf32>
    %cst_22 = arith.constant dense<0.000000e+00> : vector<64x2xf32>
    %27 = tpu.matmul %26, %25, %cst_22 {dimension_numbers = #tpu.dot_dimension_numbers<[1], [0], [0], [1], [0, 0, 1, 1], [], []>} : vector<64x64xf32>, vector<64x2xf32>, vector<64x2xf32> -> vector<64x2xf32>
    %c0_23 = arith.constant 0 : index
    %c0_24 = arith.constant 0 : index
    %28 = vector.load %arg12[%c0_23, %c0_24] : memref<64x1xf32, #tpu.memory_space<vmem>>, vector<64x1xf32>
    %29 = vector.broadcast %28 : vector<64x1xf32> to vector<64x2xf32>
    %30 = arith.addf %27, %29 : vector<64x2xf32>
    %cst_25 = arith.constant 2.000000e-01 : f32
    %31 = vector.broadcast %cst_25 : f32 to vector<64x2xf32>
    %32 = arith.mulf %31, %30 : vector<64x2xf32>
    %33 = arith.maximumf %30, %32 : vector<64x2xf32>
    %c0_26 = arith.constant 0 : index
    %c0_27 = arith.constant 0 : index
    %34 = vector.load %arg7[%c0_26, %c0_27] : memref<64x64xf32, #tpu.memory_space<vmem>>, vector<64x64xf32>
    %cst_28 = arith.constant dense<0.000000e+00> : vector<64x2xf32>
    %35 = tpu.matmul %34, %33, %cst_28 {dimension_numbers = #tpu.dot_dimension_numbers<[1], [0], [0], [1], [0, 0, 1, 1], [], []>} : vector<64x64xf32>, vector<64x2xf32>, vector<64x2xf32> -> vector<64x2xf32>
    %c0_29 = arith.constant 0 : index
    %c0_30 = arith.constant 0 : index
    %36 = vector.load %arg13[%c0_29, %c0_30] : memref<64x1xf32, #tpu.memory_space<vmem>>, vector<64x1xf32>
    %37 = vector.broadcast %36 : vector<64x1xf32> to vector<64x2xf32>
    %38 = arith.addf %35, %37 : vector<64x2xf32>
    %cst_31 = arith.constant 2.000000e-01 : f32
    %39 = vector.broadcast %cst_31 : f32 to vector<64x2xf32>
    %40 = arith.mulf %39, %38 : vector<64x2xf32>
    %41 = arith.maximumf %38, %40 : vector<64x2xf32>
    %c0_32 = arith.constant 0 : index
    %c0_33 = arith.constant 0 : index
    %42 = vector.load %arg8[%c0_32, %c0_33] : memref<16x64xf32, #tpu.memory_space<vmem>>, vector<16x64xf32>
    %cst_34 = arith.constant dense<0.000000e+00> : vector<16x2xf32>
    %43 = tpu.matmul %42, %41, %cst_34 {dimension_numbers = #tpu.dot_dimension_numbers<[1], [0], [0], [1], [0, 0, 1, 1], [], []>} : vector<16x64xf32>, vector<64x2xf32>, vector<16x2xf32> -> vector<16x2xf32>
    %c0_35 = arith.constant 0 : index
    %c0_36 = arith.constant 0 : index
    %44 = vector.load %arg14[%c0_35, %c0_36] : memref<16x1xf32, #tpu.memory_space<vmem>>, vector<16x1xf32>
    %45 = vector.broadcast %44 : vector<16x1xf32> to vector<16x2xf32>
    %46 = arith.addf %43, %45 : vector<16x2xf32>
    %47 = vector.extract_strided_slice %46 {offsets = [0, 0], sizes = [8, 2], strides = [1, 1]} : vector<16x2xf32> to vector<8x2xf32>
    %48 = vector.extract_strided_slice %46 {offsets = [8, 0], sizes = [8, 2], strides = [1, 1]} : vector<16x2xf32> to vector<8x2xf32>
    %49 = math.exp %47 : vector<8x2xf32>
    %50 = arith.mulf %49, %1 : vector<8x2xf32>
    %51 = arith.addf %50, %48 : vector<8x2xf32>
    %c0_37 = arith.constant 0 : index
    %c0_38 = arith.constant 0 : index
    %52 = vector.load %arg15[%c0_37, %c0_38] : memref<16x2xf32, #tpu.memory_space<vmem>>, vector<8x2xf32>
    tpu.vector_store %arg15[%c0_37, %c0_38], %0 {strides = array<i32>} : memref<16x2xf32, #tpu.memory_space<vmem>>, vector<8x2xf32>,
    %c8 = arith.constant 8 : index
    %c0_39 = arith.constant 0 : index
    %53 = vector.load %arg15[%c8, %c0_39] : memref<16x2xf32, #tpu.memory_space<vmem>>, vector<8x2xf32>
    tpu.vector_store %arg15[%c8, %c0_39], %51 {strides = array<i32>} : memref<16x2xf32, #tpu.memory_space<vmem>>, vector<8x2xf32>,
    %cst_40 = arith.constant dense<0.000000e+00> : vector<2xf32>
    %54 = vector.multi_reduction <add>, %47, %cst_40 [0] : vector<8x2xf32> to vector<2xf32>
    %55 = vector.shape_cast %54 : vector<2xf32> to vector<1x2xf32>
    %c0_41 = arith.constant 0 : index
    %c0_42 = arith.constant 0 : index
    %56 = vector.load %arg16[%c0_41, %c0_42] : memref<1x2xf32, #tpu.memory_space<vmem>>, vector<1x2xf32>
    tpu.vector_store %arg16[%c0_41, %c0_42], %55 {strides = array<i32>} : memref<1x2xf32, #tpu.memory_space<vmem>>, vector<1x2xf32>,
    return
  }
  func.func @transform_0(%arg0: i32) -> (i32, i32) {
    %c0_i32 = arith.constant 0 : i32
    %c0_i32_0 = arith.constant 0 : i32
    return %c0_i32, %arg0 : i32, i32
  }
  func.func @transform_1(%arg0: i32) -> (i32, i32) {
    %c0_i32 = arith.constant 0 : i32
    %c0_i32_0 = arith.constant 0 : i32
    return %c0_i32, %arg0 : i32, i32
  }
  func.func @transform_2(%arg0: i32) -> (i32, i32) {
    %c0_i32 = arith.constant 0 : i32
    %c0_i32_0 = arith.constant 0 : i32
    %c0_i32_1 = arith.constant 0 : i32
    return %c0_i32, %c0_i32_0 : i32, i32
  }
  func.func @transform_3(%arg0: i32) -> (i32, i32) {
    %c0_i32 = arith.constant 0 : i32
    %c0_i32_0 = arith.constant 0 : i32
    %c0_i32_1 = arith.constant 0 : i32
    return %c0_i32, %c0_i32_0 : i32, i32
  }
  func.func @transform_4(%arg0: i32) -> (i32, i32) {
    %c0_i32 = arith.constant 0 : i32
    %c0_i32_0 = arith.constant 0 : i32
    %c0_i32_1 = arith.constant 0 : i32
    return %c0_i32, %c0_i32_0 : i32, i32
  }
  func.func @transform_5(%arg0: i32) -> (i32, i32) {
    %c0_i32 = arith.constant 0 : i32
    %c0_i32_0 = arith.constant 0 : i32
    %c0_i32_1 = arith.constant 0 : i32
    return %c0_i32, %c0_i32_0 : i32, i32
  }
  func.func @transform_6(%arg0: i32) -> (i32, i32) {
    %c0_i32 = arith.constant 0 : i32
    %c0_i32_0 = arith.constant 0 : i32
    %c0_i32_1 = arith.constant 0 : i32
    return %c0_i32, %c0_i32_0 : i32, i32
  }
  func.func @transform_7(%arg0: i32) -> (i32, i32) {
    %c0_i32 = arith.constant 0 : i32
    %c0_i32_0 = arith.constant 0 : i32
    %c0_i32_1 = arith.constant 0 : i32
    return %c0_i32, %c0_i32_0 : i32, i32
  }
  func.func @transform_8(%arg0: i32) -> (i32, i32) {
    %c0_i32 = arith.constant 0 : i32
    %c0_i32_0 = arith.constant 0 : i32
    %c0_i32_1 = arith.constant 0 : i32
    return %c0_i32, %c0_i32_0 : i32, i32
  }
  func.func @transform_9(%arg0: i32) -> (i32, i32) {
    %c0_i32 = arith.constant 0 : i32
    %c0_i32_0 = arith.constant 0 : i32
    %c0_i32_1 = arith.constant 0 : i32
    return %c0_i32, %c0_i32_0 : i32, i32
  }
  func.func @transform_10(%arg0: i32) -> (i32, i32) {
    %c0_i32 = arith.constant 0 : i32
    %c0_i32_0 = arith.constant 0 : i32
    %c0_i32_1 = arith.constant 0 : i32
    return %c0_i32, %c0_i32_0 : i32, i32
  }
  func.func @transform_11(%arg0: i32) -> (i32, i32) {
    %c0_i32 = arith.constant 0 : i32
    %c0_i32_0 = arith.constant 0 : i32
    %c0_i32_1 = arith.constant 0 : i32
    return %c0_i32, %c0_i32_0 : i32, i32
  }
  func.func @transform_12(%arg0: i32) -> (i32, i32) {
    %c0_i32 = arith.constant 0 : i32
    %c0_i32_0 = arith.constant 0 : i32
    %c0_i32_1 = arith.constant 0 : i32
    return %c0_i32, %c0_i32_0 : i32, i32
  }
  func.func @transform_13(%arg0: i32) -> (i32, i32) {
    %c0_i32 = arith.constant 0 : i32
    %c0_i32_0 = arith.constant 0 : i32
    %c0_i32_1 = arith.constant 0 : i32
    return %c0_i32, %c0_i32_0 : i32, i32
  }
  func.func @transform_14(%arg0: i32) -> (i32, i32) {
    %c0_i32 = arith.constant 0 : i32
    %c0_i32_0 = arith.constant 0 : i32
    return %c0_i32, %arg0 : i32, i32
  }
  func.func @transform_15(%arg0: i32) -> (i32, i32) {
    %c0_i32 = arith.constant 0 : i32
    %c0_i32_0 = arith.constant 0 : i32
    return %c0_i32, %arg0 : i32, i32
  }
}

</mosaic_0001>

<llo_original>
// kernel: tpu_custom_call.1
$region0: #{tpu_custom_call.1}
  #allocation0 [shape = 'u32[]', space=smem, size = 0x4, offset = 0x4, fixed_abs, tag = 'smem constant byte address 0x4 - core index']
  #allocation1 [shape = 'u32[144,128]{1,0:T(1,128)}', space=vmem, size = 0x12000, scoped, tag = 'internal scratch']
  %s0 = inlined_call_operand.vmem [shape: f32[8,2], index: 0, kind: input, shape index: {}]
  %s1 = inlined_call_operand.vmem [shape: f32[8,2], index: 1, kind: input, shape index: {}]
  %s2 = inlined_call_operand.vmem [shape: f32[64,8], index: 2, kind: input, shape index: {}]
  %s3 = inlined_call_operand.vmem [shape: f32[64,64], index: 3, kind: input, shape index: {}]
  %s4 = inlined_call_operand.vmem [shape: f32[64,64], index: 4, kind: input, shape index: {}]
  %s5 = inlined_call_operand.vmem [shape: f32[64,64], index: 5, kind: input, shape index: {}]
  %s6 = inlined_call_operand.vmem [shape: f32[64,64], index: 6, kind: input, shape index: {}]
  %s7 = inlined_call_operand.vmem [shape: f32[16,64], index: 7, kind: input, shape index: {}]
  %s8 = inlined_call_operand.vmem [shape: f32[64,1], index: 8, kind: input, shape index: {}]
  %s9 = inlined_call_operand.vmem [shape: f32[64,1], index: 9, kind: input, shape index: {}]
  %s10 = inlined_call_operand.vmem [shape: f32[64,1], index: 10, kind: input, shape index: {}]
  %s11 = inlined_call_operand.vmem [shape: f32[64,1], index: 11, kind: input, shape index: {}]
  %s12 = inlined_call_operand.vmem [shape: f32[64,1], index: 12, kind: input, shape index: {}]
  %s13 = inlined_call_operand.vmem [shape: f32[16,1], index: 13, kind: input, shape index: {}]
  %s14 = inlined_call_operand.vmem [shape: f32[16,2], index: 14, kind: output, shape index: {0}]
  %s15 = inlined_call_operand.hbm [shape: f32[1,2], index: 15, kind: output, shape index: {1}]
  %16 = xla_tuple %s14, %s15
  %s17 = sld [smem:[#allocation0]]
  $region74: #{tpu_custom_call.1} parent=0
    _
  %s19 = ssub.s32 1, %s17
  %s20 = scalar_select 0, %s19, %s17
  $region1: #{tpu_custom_call.1} parent=0
    #allocation2 [shape = 'u8[512]{0}', space=vmem, size = 0x400, scoped, tag = 'output window, operand 1, single buffered']
    #allocation3 [shape = 's32[1]{0}', space=sflag, size = 0x4, scoped, tag = 'scoped memory for tpu_custom_call.1']
    %21 = vsyncpa [#allocation3], 0
    // Predicated region
    $region2: #{tpu_custom_call.1} parent=1 // pred_check
      _
    $region3: #{tpu_custom_call.1} parent=1 // pred_check_branch
      %23 = sbr.rel (0) target = $region5
    $region4: #{tpu_custom_call.1} parent=1 // pred_region
      _
    $region5: #{tpu_custom_call.1} parent=1 // pred_fallthru
      _
    // Predicated region
    $region6: #{tpu_custom_call.1} parent=1 // pred_check
      _
    $region7: #{tpu_custom_call.1} parent=1 // pred_check_branch
      %25 = sbr.rel (0) target = $region9
    $region8: #{tpu_custom_call.1} parent=1 // pred_region
      _
    $region9: #{tpu_custom_call.1} parent=1 // pred_fallthru
      _
    // Predicated region
    $region10: #{tpu_custom_call.1} parent=1 // pred_check
      _
    $region11: #{tpu_custom_call.1} parent=1 // pred_check_branch
      %27 = sbr.rel (0) target = $region13
    $region12: #{tpu_custom_call.1} parent=1 // pred_region
      _
    $region13: #{tpu_custom_call.1} parent=1 // pred_fallthru
      _
    // Predicated region
    $region14: #{tpu_custom_call.1} parent=1 // pred_check
      _
    $region15: #{tpu_custom_call.1} parent=1 // pred_check_branch
      %29 = sbr.rel (0) target = $region17
    $region16: #{tpu_custom_call.1} parent=1 // pred_region
      _
    $region17: #{tpu_custom_call.1} parent=1 // pred_fallthru
      _
    // Predicated region
    $region18: #{tpu_custom_call.1} parent=1 // pred_check
      _
    $region19: #{tpu_custom_call.1} parent=1 // pred_check_branch
      %31 = sbr.rel (0) target = $region21
    $region20: #{tpu_custom_call.1} parent=1 // pred_region
      _
    $region21: #{tpu_custom_call.1} parent=1 // pred_fallthru
      _
    // Predicated region
    $region22: #{tpu_custom_call.1} parent=1 // pred_check
      _
    $region23: #{tpu_custom_call.1} parent=1 // pred_check_branch
      %33 = sbr.rel (0) target = $region25
    $region24: #{tpu_custom_call.1} parent=1 // pred_region
      _
    $region25: #{tpu_custom_call.1} parent=1 // pred_fallthru
      _
    // Predicated region
    $region26: #{tpu_custom_call.1} parent=1 // pred_check
      _
    $region27: #{tpu_custom_call.1} parent=1 // pred_check_branch
      %35 = sbr.rel (0) target = $region29
    $region28: #{tpu_custom_call.1} parent=1 // pred_region
      _
    $region29: #{tpu_custom_call.1} parent=1 // pred_fallthru
      _
    // Predicated region
    $region30: #{tpu_custom_call.1} parent=1 // pred_check
      _
    $region31: #{tpu_custom_call.1} parent=1 // pred_check_branch
      %37 = sbr.rel (0) target = $region33
    $region32: #{tpu_custom_call.1} parent=1 // pred_region
      _
    $region33: #{tpu_custom_call.1} parent=1 // pred_fallthru
      _
    // Predicated region
    $region34: #{tpu_custom_call.1} parent=1 // pred_check
      _
    $region35: #{tpu_custom_call.1} parent=1 // pred_check_branch
      %39 = sbr.rel (0) target = $region37
    $region36: #{tpu_custom_call.1} parent=1 // pred_region
      _
    $region37: #{tpu_custom_call.1} parent=1 // pred_fallthru
      _
    // Predicated region
    $region38: #{tpu_custom_call.1} parent=1 // pred_check
      _
    $region39: #{tpu_custom_call.1} parent=1 // pred_check_branch
      %41 = sbr.rel (0) target = $region41
    $region40: #{tpu_custom_call.1} parent=1 // pred_region
      _
    $region41: #{tpu_custom_call.1} parent=1 // pred_fallthru
      _
    // Predicated region
    $region42: #{tpu_custom_call.1} parent=1 // pred_check
      _
    $region43: #{tpu_custom_call.1} parent=1 // pred_check_branch
      %43 = sbr.rel (0) target = $region45
    $region44: #{tpu_custom_call.1} parent=1 // pred_region
      _
    $region45: #{tpu_custom_call.1} parent=1 // pred_fallthru
      _
    // Predicated region
    $region46: #{tpu_custom_call.1} parent=1 // pred_check
      _
    $region47: #{tpu_custom_call.1} parent=1 // pred_check_branch
      %45 = sbr.rel (0) target = $region49
    $region48: #{tpu_custom_call.1} parent=1 // pred_region
      _
    $region49: #{tpu_custom_call.1} parent=1 // pred_fallthru
      _
    // Predicated region
    $region50: #{tpu_custom_call.1} parent=1 // pred_check
      _
    $region51: #{tpu_custom_call.1} parent=1 // pred_check_branch
      %47 = sbr.rel (0) target = $region53
    $region52: #{tpu_custom_call.1} parent=1 // pred_region
      _
    $region53: #{tpu_custom_call.1} parent=1 // pred_fallthru
      _
    // Predicated region
    $region54: #{tpu_custom_call.1} parent=1 // pred_check
      _
    $region55: #{tpu_custom_call.1} parent=1 // pred_check_branch
      %49 = sbr.rel (0) target = $region57
    $region56: #{tpu_custom_call.1} parent=1 // pred_region
      _
    $region57: #{tpu_custom_call.1} parent=1 // pred_fallthru
      _
    %v50 = vld [vmem:[%s0] sm:$0xff]
    %v51 = vld [vmem:[%s1] sm:$0xff]
    %v52 = vld [vmem:[%s2] sm:$0xff]
    %v53 = vld [vmem:[%s2 + $0x8] sm:$0xff]
    %v54 = vld [vmem:[%s2 + $0x10] sm:$0xff]
    %v55 = vld [vmem:[%s2 + $0x18] sm:$0xff]
    %v56 = vld [vmem:[%s2 + $0x20] sm:$0xff]
    %v57 = vld [vmem:[%s2 + $0x28] sm:$0xff]
    %v58 = vld [vmem:[%s2 + $0x30] sm:$0xff]
    %v59 = vld [vmem:[%s2 + $0x38] sm:$0xff]
    %v60 = vld [vmem:[%s8] sm:$0xff]
    %v61 = vld [vmem:[%s8 + $0x8] sm:$0xff]
    %v62 = vld [vmem:[%s8 + $0x10] sm:$0xff]
    %v63 = vld [vmem:[%s8 + $0x18] sm:$0xff]
    %v64 = vld [vmem:[%s8 + $0x20] sm:$0xff]
    %v65 = vld [vmem:[%s8 + $0x28] sm:$0xff]
    %v66 = vld [vmem:[%s8 + $0x30] sm:$0xff]
    %v67 = vld [vmem:[%s8 + $0x38] sm:$0xff]
    %69 = vset.pattern.permute.xlu0 0
    %70 = vperm.xlu0 %69, %v60
    %v71 = vpop.permute.xlu0 %70
    %74 = vset.pattern.permute.xlu0 0
    %75 = vperm.xlu0 %74, %v61
    %v76 = vpop.permute.xlu0 %75
    %79 = vset.pattern.permute.xlu0 0
    %80 = vperm.xlu0 %79, %v62
    %v81 = vpop.permute.xlu0 %80
    %84 = vset.pattern.permute.xlu0 0
    %85 = vperm.xlu0 %84, %v63
    %v86 = vpop.permute.xlu0 %85
    %89 = vset.pattern.permute.xlu0 0
    %90 = vperm.xlu0 %89, %v64
    %v91 = vpop.permute.xlu0 %90
    %94 = vset.pattern.permute.xlu0 0
    %95 = vperm.xlu0 %94, %v65
    %v96 = vpop.permute.xlu0 %95
    %99 = vset.pattern.permute.xlu0 0
    %100 = vperm.xlu0 %99, %v66
    %v101 = vpop.permute.xlu0 %100
    %104 = vset.pattern.permute.xlu0 0
    %105 = vperm.xlu0 %104, %v67
    %v106 = vpop.permute.xlu0 %105
    %vm108 = vcmask 64512
    %v110 = vsel %vm108, %v52, 0
    %v113 = vsel %vm108, %v53, 0
    %v116 = vsel %vm108, %v54, 0
    %v119 = vsel %vm108, %v55, 0
    %v122 = vsel %vm108, %v56, 0
    %v125 = vsel %vm108, %v57, 0
    %v128 = vsel %vm108, %v58, 0
    %v131 = vsel %vm108, %v59, 0
    %133 = vmatprep.subr.mxu0 0.0
    %134 = vmatpush1.msra.mxu0 %v50
    %135 = vmatprep.subr.mxu0 0.0
    %136 = vmatpush1.msra.mxu0 0.0
    %137 = vmatprep.subr.mxu0 0.0
    %138 = vmatpush1.msra.mxu0 0.0
    %139 = vmatprep.subr.mxu0 0.0
    %140 = vmatpush1.msra.mxu0 0.0
    %141 = vmatprep.subr.mxu0 0.0
    %142 = vmatpush1.msra.mxu0 0.0
    %143 = vmatprep.subr.mxu0 0.0
    %144 = vmatpush1.msra.mxu0 0.0
    %145 = vmatprep.subr.mxu0 0.0
    %146 = vmatpush1.msra.mxu0 0.0
    %147 = vmatprep.subr.mxu0 0.0
    %148 = vmatpush1.msra.mxu0 0.0
    %149 = vmatprep.subr.mxu0 0.0
    %150 = vmatpush1.msra.mxu0 0.0
    %151 = vmatprep.subr.mxu0 0.0
    %152 = vmatpush1.msra.mxu0 0.0
    %153 = vmatprep.subr.mxu0 0.0
    %154 = vmatpush1.msra.mxu0 0.0
    %155 = vmatprep.subr.mxu0 0.0
    %156 = vmatpush1.msra.mxu0 0.0
    %157 = vmatprep.subr.mxu0 0.0
    %158 = vmatpush1.msra.mxu0 0.0
    %159 = vmatprep.subr.mxu0 0.0
    %160 = vmatpush1.msra.mxu0 0.0
    %161 = vmatprep.subr.mxu0 0.0
    %162 = vmatpush1.msra.mxu0 0.0
    %163 = vmatprep.subr.mxu0 0.0
    %164 = vmatpush1.msra.mxu0 0.0
    %165 = vmatprep.subr.mxu0 0.0
    %166 = vmatpush1.msra.mxu0 0.0
    %167 = vmatprep.subr.mxu0 0.0
    %168 = vmatpush1.msra.mxu0 0.0
    %169 = vmatprep.subr.mxu0 0.0
    %170 = vmatpush1.msra.mxu0 0.0
    %171 = vmatprep.subr.mxu0 0.0
    %172 = vmatpush1.msra.mxu0 0.0
    %173 = vmatprep.subr.mxu0 0.0
    %174 = vmatpush1.msra.mxu0 0.0
    %175 = vmatprep.subr.mxu0 0.0
    %176 = vmatpush1.msra.mxu0 0.0
    %177 = vmatprep.subr.mxu0 0.0
    %178 = vmatpush1.msra.mxu0 0.0
    %179 = vmatprep.subr.mxu0 0.0
    %180 = vmatpush1.msra.mxu0 0.0
    %181 = vmatprep.subr.mxu0 0.0
    %182 = vmatpush1.msra.mxu0 0.0
    %183 = vmatprep.subr.mxu0 0.0
    %184 = vmatpush1.msra.mxu0 0.0
    %185 = vmatprep.subr.mxu0 0.0
    %186 = vmatpush1.msra.mxu0 0.0
    %187 = vmatprep.subr.mxu0 0.0
    %188 = vmatpush1.msra.mxu0 0.0
    %189 = vmatprep.subr.mxu0 0.0
    %190 = vmatpush1.msra.mxu0 0.0
    %191 = vmatprep.subr.mxu0 0.0
    %192 = vmatpush1.msra.mxu0 0.0
    %193 = vmatprep.subr.mxu0 0.0
    %194 = vmatpush1.msra.mxu0 0.0
    %195 = vmatprep.subr.mxu0 0.0
    %196 = vmatpush1.msra.mxu0 0.0
    %197 = vmatprep.mubr.f32.mxu0 0.0
    %198 = vmatmul.mubr.f32.gmra.mrb[0].mxu0 %v110
    %v199 = vpop.f32.mrb[0].mxu0
    %v200 = vadd.f32 %v71, %v199
    %v201 = vpop.f32.mrb[0].mxu0
    %202 = vmatprep.mubr.f32.mxu0 0.0
    %203 = vmatmul.mubr.f32.gmra.mrb[0].mxu0 %v113
    %v204 = vpop.f32.mrb[0].mxu0
    %v205 = vadd.f32 %v76, %v204
    %v206 = vpop.f32.mrb[0].mxu0
    %207 = vmatprep.mubr.f32.mxu0 0.0
    %208 = vmatmul.mubr.f32.gmra.mrb[0].mxu0 %v116
    %v209 = vpop.f32.mrb[0].mxu0
    %v210 = vadd.f32 %v81, %v209
    %v211 = vpop.f32.mrb[0].mxu0
    %212 = vmatprep.mubr.f32.mxu0 0.0
    %213 = vmatmul.mubr.f32.gmra.mrb[0].mxu0 %v119
    %v214 = vpop.f32.mrb[0].mxu0
    %v215 = vadd.f32 %v86, %v214
    %v216 = vpop.f32.mrb[0].mxu0
    %217 = vmatprep.mubr.f32.mxu0 0.0
    %218 = vmatmul.mubr.f32.gmra.mrb[0].mxu0 %v122
    %v219 = vpop.f32.mrb[0].mxu0
    %v220 = vadd.f32 %v91, %v219
    %v221 = vpop.f32.mrb[0].mxu0
    %222 = vmatprep.mubr.f32.mxu0 0.0
    %223 = vmatmul.mubr.f32.gmra.mrb[0].mxu0 %v125
    %v224 = vpop.f32.mrb[0].mxu0
    %v225 = vadd.f32 %v96, %v224
    %v226 = vpop.f32.mrb[0].mxu0
    %227 = vmatprep.mubr.f32.mxu0 0.0
    %228 = vmatmul.mubr.f32.gmra.mrb[0].mxu0 %v128
    %v229 = vpop.f32.mrb[0].mxu0
    %v230 = vadd.f32 %v101, %v229
    %v231 = vpop.f32.mrb[0].mxu0
    %232 = vmatprep.mubr.f32.mxu0 0.0
    %233 = vmatmul.mubr.f32.gmra.mrb[0].mxu0 %v131
    %v234 = vpop.f32.mrb[0].mxu0
    %v235 = vadd.f32 %v106, %v234
    %v236 = vpop.f32.mrb[0].mxu0
    %237 = vdwg.mxu0
    %v238 = vmul.f32 %v200, 0.2
    %v239 = vmul.f32 %v205, 0.2
    %v240 = vmul.f32 %v210, 0.2
    %v241 = vmul.f32 %v215, 0.2
    %v242 = vmul.f32 %v220, 0.2
    %v243 = vmul.f32 %v225, 0.2
    %v244 = vmul.f32 %v230, 0.2
    %v245 = vmul.f32 %v235, 0.2
    %v246 = vmax.f32 %v200, %v238
    %v247 = vmax.f32 %v205, %v239
    %v248 = vmax.f32 %v210, %v240
    %v249 = vmax.f32 %v215, %v241
    %v250 = vmax.f32 %v220, %v242
    %v251 = vmax.f32 %v225, %v243
    %v252 = vmax.f32 %v230, %v244
    %v253 = vmax.f32 %v235, %v245
    %v254 = vld [vmem:[%s3] sm:$0xff]
    %v255 = vld [vmem:[%s3 + $0x8] sm:$0xff]
    %v256 = vld [vmem:[%s3 + $0x10] sm:$0xff]
    %v257 = vld [vmem:[%s3 + $0x18] sm:$0xff]
    %v258 = vld [vmem:[%s3 + $0x20] sm:$0xff]
    %v259 = vld [vmem:[%s3 + $0x28] sm:$0xff]
    %v260 = vld [vmem:[%s3 + $0x30] sm:$0xff]
    %v261 = vld [vmem:[%s3 + $0x38] sm:$0xff]
    %v262 = vld [vmem:[%s9] sm:$0xff]
    %v263 = vld [vmem:[%s9 + $0x8] sm:$0xff]
    %v264 = vld [vmem:[%s9 + $0x10] sm:$0xff]
    %v265 = vld [vmem:[%s9 + $0x18] sm:$0xff]
    %v266 = vld [vmem:[%s9 + $0x20] sm:$0xff]
    %v267 = vld [vmem:[%s9 + $0x28] sm:$0xff]
    %v268 = vld [vmem:[%s9 + $0x30] sm:$0xff]
    %v269 = vld [vmem:[%s9 + $0x38] sm:$0xff]
    %271 = vset.pattern.permute.xlu0 0
    %272 = vperm.xlu0 %271, %v262
    %v273 = vpop.permute.xlu0 %272
    %276 = vset.pattern.permute.xlu0 0
    %277 = vperm.xlu0 %276, %v263
    %v278 = vpop.permute.xlu0 %277
    %281 = vset.pattern.permute.xlu0 0
    %282 = vperm.xlu0 %281, %v264
    %v283 = vpop.permute.xlu0 %282
    %286 = vset.pattern.permute.xlu0 0
    %287 = vperm.xlu0 %286, %v265
    %v288 = vpop.permute.xlu0 %287
    %291 = vset.pattern.permute.xlu0 0
    %292 = vperm.xlu0 %291, %v266
    %v293 = vpop.permute.xlu0 %292
    %296 = vset.pattern.permute.xlu0 0
    %297 = vperm.xlu0 %296, %v267
    %v298 = vpop.permute.xlu0 %297
    %301 = vset.pattern.permute.xlu0 0
    %302 = vperm.xlu0 %301, %v268
    %v303 = vpop.permute.xlu0 %302
    %306 = vset.pattern.permute.xlu0 0
    %307 = vperm.xlu0 %306, %v269
    %v308 = vpop.permute.xlu0 %307
    %vm310 = vcmask 523264
    %v312 = vsel %vm310, %v254, 0
    %v315 = vsel %vm310, %v255, 0
    %v318 = vsel %vm310, %v256, 0
    %v321 = vsel %vm310, %v257, 0
    %v324 = vsel %vm310, %v258, 0
    %v327 = vsel %vm310, %v259, 0
    %v330 = vsel %vm310, %v260, 0
    %v333 = vsel %vm310, %v261, 0
    %335 = vmatprep.subr.mxu0 0.0
    %336 = vmatpush1.msra.mxu0 %v246
    %337 = vmatprep.subr.mxu0 0.0
    %338 = vmatpush1.msra.mxu0 %v247
    %339 = vmatprep.subr.mxu0 0.0
    %340 = vmatpush1.msra.mxu0 %v248
    %341 = vmatprep.subr.mxu0 0.0
    %342 = vmatpush1.msra.mxu0 %v249
    %343 = vmatprep.subr.mxu0 0.0
    %344 = vmatpush1.msra.mxu0 %v250
    %345 = vmatprep.subr.mxu0 0.0
    %346 = vmatpush1.msra.mxu0 %v251
    %347 = vmatprep.subr.mxu0 0.0
    %348 = vmatpush1.msra.mxu0 %v252
    %349 = vmatprep.subr.mxu0 0.0
    %350 = vmatpush1.msra.mxu0 %v253
    %351 = vmatprep.subr.mxu0 0.0
    %352 = vmatpush1.msra.mxu0 0.0
    %353 = vmatprep.subr.mxu0 0.0
    %354 = vmatpush1.msra.mxu0 0.0
    %355 = vmatprep.subr.mxu0 0.0
    %356 = vmatpush1.msra.mxu0 0.0
    %357 = vmatprep.subr.mxu0 0.0
    %358 = vmatpush1.msra.mxu0 0.0
    %359 = vmatprep.subr.mxu0 0.0
    %360 = vmatpush1.msra.mxu0 0.0
    %361 = vmatprep.subr.mxu0 0.0
    %362 = vmatpush1.msra.mxu0 0.0
    %363 = vmatprep.subr.mxu0 0.0
    %364 = vmatpush1.msra.mxu0 0.0
    %365 = vmatprep.subr.mxu0 0.0
    %366 = vmatpush1.msra.mxu0 0.0
    %367 = vmatprep.subr.mxu0 0.0
    %368 = vmatpush1.msra.mxu0 0.0
    %369 = vmatprep.subr.mxu0 0.0
    %370 = vmatpush1.msra.mxu0 0.0
    %371 = vmatprep.subr.mxu0 0.0
    %372 = vmatpush1.msra.mxu0 0.0
    %373 = vmatprep.subr.mxu0 0.0
    %374 = vmatpush1.msra.mxu0 0.0
    %375 = vmatprep.subr.mxu0 0.0
    %376 = vmatpush1.msra.mxu0 0.0
    %377 = vmatprep.subr.mxu0 0.0
    %378 = vmatpush1.msra.mxu0 0.0
    %379 = vmatprep.subr.mxu0 0.0
    %380 = vmatpush1.msra.mxu0 0.0
    %381 = vmatprep.subr.mxu0 0.0
    %382 = vmatpush1.msra.mxu0 0.0
    %383 = vmatprep.subr.mxu0 0.0
    %384 = vmatpush1.msra.mxu0 0.0
    %385 = vmatprep.subr.mxu0 0.0
    %386 = vmatpush1.msra.mxu0 0.0
    %387 = vmatprep.subr.mxu0 0.0
    %388 = vmatpush1.msra.mxu0 0.0
    %389 = vmatprep.subr.mxu0 0.0
    %390 = vmatpush1.msra.mxu0 0.0
    %391 = vmatprep.subr.mxu0 0.0
    %392 = vmatpush1.msra.mxu0 0.0
    %393 = vmatprep.subr.mxu0 0.0
    %394 = vmatpush1.msra.mxu0 0.0
    %395 = vmatprep.subr.mxu0 0.0
    %396 = vmatpush1.msra.mxu0 0.0
    %397 = vmatprep.subr.mxu0 0.0
    %398 = vmatpush1.msra.mxu0 0.0
    %399 = vmatprep.mubr.f32.mxu0 0.0
    %400 = vmatmul.mubr.f32.gmra.mrb[0].mxu0 %v312
    %v401 = vpop.f32.mrb[0].mxu0
    %v402 = vadd.f32 %v273, %v401
    %v403 = vpop.f32.mrb[0].mxu0
    %404 = vmatprep.mubr.f32.mxu0 0.0
    %405 = vmatmul.mubr.f32.gmra.mrb[0].mxu0 %v315
    %v406 = vpop.f32.mrb[0].mxu0
    %v407 = vadd.f32 %v278, %v406
    %v408 = vpop.f32.mrb[0].mxu0
    %409 = vmatprep.mubr.f32.mxu0 0.0
    %410 = vmatmul.mubr.f32.gmra.mrb[0].mxu0 %v318
    %v411 = vpop.f32.mrb[0].mxu0
    %v412 = vadd.f32 %v283, %v411
    %v413 = vpop.f32.mrb[0].mxu0
    %414 = vmatprep.mubr.f32.mxu0 0.0
    %415 = vmatmul.mubr.f32.gmra.mrb[0].mxu0 %v321
    %v416 = vpop.f32.mrb[0].mxu0
    %v417 = vadd.f32 %v288, %v416
    %v418 = vpop.f32.mrb[0].mxu0
    %419 = vmatprep.mubr.f32.mxu0 0.0
    %420 = vmatmul.mubr.f32.gmra.mrb[0].mxu0 %v324
    %v421 = vpop.f32.mrb[0].mxu0
    %v422 = vadd.f32 %v293, %v421
    %v423 = vpop.f32.mrb[0].mxu0
    %424 = vmatprep.mubr.f32.mxu0 0.0
    %425 = vmatmul.mubr.f32.gmra.mrb[0].mxu0 %v327
    %v426 = vpop.f32.mrb[0].mxu0
    %v427 = vadd.f32 %v298, %v426
    %v428 = vpop.f32.mrb[0].mxu0
    %429 = vmatprep.mubr.f32.mxu0 0.0
    %430 = vmatmul.mubr.f32.gmra.mrb[0].mxu0 %v330
    %v431 = vpop.f32.mrb[0].mxu0
    %v432 = vadd.f32 %v303, %v431
    %v433 = vpop.f32.mrb[0].mxu0
    %434 = vmatprep.mubr.f32.mxu0 0.0
    %435 = vmatmul.mubr.f32.gmra.mrb[0].mxu0 %v333
    %v436 = vpop.f32.mrb[0].mxu0
    %v437 = vadd.f32 %v308, %v436
    %v438 = vpop.f32.mrb[0].mxu0
    %439 = vdwg.mxu0
    %v440 = vmul.f32 %v402, 0.2
    %v441 = vmul.f32 %v407, 0.2
    %v442 = vmul.f32 %v412, 0.2
    %v443 = vmul.f32 %v417, 0.2
    %v444 = vmul.f32 %v422, 0.2
    %v445 = vmul.f32 %v427, 0.2
    %v446 = vmul.f32 %v432, 0.2
    %v447 = vmul.f32 %v437, 0.2
    %v448 = vmax.f32 %v402, %v440
    %v449 = vmax.f32 %v407, %v441
    %v450 = vmax.f32 %v412, %v442
    %v451 = vmax.f32 %v417, %v443
    %v452 = vmax.f32 %v422, %v444
    %v453 = vmax.f32 %v427, %v445
    %v454 = vmax.f32 %v432, %v446
    %v455 = vmax.f32 %v437, %v447
    %v456 = vld [vmem:[%s4] sm:$0xff]
    %v457 = vld [vmem:[%s4 + $0x8] sm:$0xff]
    %v458 = vld [vmem:[%s4 + $0x10] sm:$0xff]
    %v459 = vld [vmem:[%s4 + $0x18] sm:$0xff]
    %v460 = vld [vmem:[%s4 + $0x20] sm:$0xff]
    %v461 = vld [vmem:[%s4 + $0x28] sm:$0xff]
    %v462 = vld [vmem:[%s4 + $0x30] sm:$0xff]
    %v463 = vld [vmem:[%s4 + $0x38] sm:$0xff]
    %v464 = vld [vmem:[%s10] sm:$0xff]
    %v465 = vld [vmem:[%s10 + $0x8] sm:$0xff]
    %v466 = vld [vmem:[%s10 + $0x10] sm:$0xff]
    %v467 = vld [vmem:[%s10 + $0x18] sm:$0xff]
    %v468 = vld [vmem:[%s10 + $0x20] sm:$0xff]
    %v469 = vld [vmem:[%s10 + $0x28] sm:$0xff]
    %v470 = vld [vmem:[%s10 + $0x30] sm:$0xff]
    %v471 = vld [vmem:[%s10 + $0x38] sm:$0xff]
    %473 = vset.pattern.permute.xlu0 0
    %474 = vperm.xlu0 %473, %v464
    %v475 = vpop.permute.xlu0 %474
    %478 = vset.pattern.permute.xlu0 0
    %479 = vperm.xlu0 %478, %v465
    %v480 = vpop.permute.xlu0 %479
    %483 = vset.pattern.permute.xlu0 0
    %484 = vperm.xlu0 %483, %v466
    %v485 = vpop.permute.xlu0 %484
    %488 = vset.pattern.permute.xlu0 0
    %489 = vperm.xlu0 %488, %v467
    %v490 = vpop.permute.xlu0 %489
    %493 = vset.pattern.permute.xlu0 0
    %494 = vperm.xlu0 %493, %v468
    %v495 = vpop.permute.xlu0 %494
    %498 = vset.pattern.permute.xlu0 0
    %499 = vperm.xlu0 %498, %v469
    %v500 = vpop.permute.xlu0 %499
    %503 = vset.pattern.permute.xlu0 0
    %504 = vperm.xlu0 %503, %v470
    %v505 = vpop.permute.xlu0 %504
    %508 = vset.pattern.permute.xlu0 0
    %509 = vperm.xlu0 %508, %v471
    %v510 = vpop.permute.xlu0 %509
    %v513 = vsel %vm310, %v456, 0
    %v516 = vsel %vm310, %v457, 0
    %v519 = vsel %vm310, %v458, 0
    %v522 = vsel %vm310, %v459, 0
    %v525 = vsel %vm310, %v460, 0
    %v528 = vsel %vm310, %v461, 0
    %v531 = vsel %vm310, %v462, 0
    %v534 = vsel %vm310, %v463, 0
    %536 = vmatprep.subr.mxu0 0.0
    %537 = vmatpush1.msra.mxu0 %v448
    %538 = vmatprep.subr.mxu0 0.0
    %539 = vmatpush1.msra.mxu0 %v449
    %540 = vmatprep.subr.mxu0 0.0
    %541 = vmatpush1.msra.mxu0 %v450
    %542 = vmatprep.subr.mxu0 0.0
    %543 = vmatpush1.msra.mxu0 %v451
    %544 = vmatprep.subr.mxu0 0.0
    %545 = vmatpush1.msra.mxu0 %v452
    %546 = vmatprep.subr.mxu0 0.0
    %547 = vmatpush1.msra.mxu0 %v453
    %548 = vmatprep.subr.mxu0 0.0
    %549 = vmatpush1.msra.mxu0 %v454
    %550 = vmatprep.subr.mxu0 0.0
    %551 = vmatpush1.msra.mxu0 %v455
    %552 = vmatprep.subr.mxu0 0.0
    %553 = vmatpush1.msra.mxu0 0.0
    %554 = vmatprep.subr.mxu0 0.0
    %555 = vmatpush1.msra.mxu0 0.0
    %556 = vmatprep.subr.mxu0 0.0
    %557 = vmatpush1.msra.mxu0 0.0
    %558 = vmatprep.subr.mxu0 0.0
    %559 = vmatpush1.msra.mxu0 0.0
    %560 = vmatprep.subr.mxu0 0.0
    %561 = vmatpush1.msra.mxu0 0.0
    %562 = vmatprep.subr.mxu0 0.0
    %563 = vmatpush1.msra.mxu0 0.0
    %564 = vmatprep.subr.mxu0 0.0
    %565 = vmatpush1.msra.mxu0 0.0
    %566 = vmatprep.subr.mxu0 0.0
    %567 = vmatpush1.msra.mxu0 0.0
    %568 = vmatprep.subr.mxu0 0.0
    %569 = vmatpush1.msra.mxu0 0.0
    %570 = vmatprep.subr.mxu0 0.0
    %571 = vmatpush1.msra.mxu0 0.0
    %572 = vmatprep.subr.mxu0 0.0
    %573 = vmatpush1.msra.mxu0 0.0
    %574 = vmatprep.subr.mxu0 0.0
    %575 = vmatpush1.msra.mxu0 0.0
    %576 = vmatprep.subr.mxu0 0.0
    %577 = vmatpush1.msra.mxu0 0.0
    %578 = vmatprep.subr.mxu0 0.0
    %579 = vmatpush1.msra.mxu0 0.0
    %580 = vmatprep.subr.mxu0 0.0
    %581 = vmatpush1.msra.mxu0 0.0
    %582 = vmatprep.subr.mxu0 0.0
    %583 = vmatpush1.msra.mxu0 0.0
    %584 = vmatprep.subr.mxu0 0.0
    %585 = vmatpush1.msra.mxu0 0.0
    %586 = vmatprep.subr.mxu0 0.0
    %587 = vmatpush1.msra.mxu0 0.0
    %588 = vmatprep.subr.mxu0 0.0
    %589 = vmatpush1.msra.mxu0 0.0
    %590 = vmatprep.subr.mxu0 0.0
    %591 = vmatpush1.msra.mxu0 0.0
    %592 = vmatprep.subr.mxu0 0.0
    %593 = vmatpush1.msra.mxu0 0.0
    %594 = vmatprep.subr.mxu0 0.0
    %595 = vmatpush1.msra.mxu0 0.0
    %596 = vmatprep.subr.mxu0 0.0
    %597 = vmatpush1.msra.mxu0 0.0
    %598 = vmatprep.subr.mxu0 0.0
    %599 = vmatpush1.msra.mxu0 0.0
    %600 = vmatprep.mubr.f32.mxu0 0.0
    %601 = vmatmul.mubr.f32.gmra.mrb[0].mxu0 %v513
    %v602 = vpop.f32.mrb[0].mxu0
    %v603 = vadd.f32 %v475, %v602
    %v604 = vpop.f32.mrb[0].mxu0
    %605 = vmatprep.mubr.f32.mxu0 0.0
    %606 = vmatmul.mubr.f32.gmra.mrb[0].mxu0 %v516
    %v607 = vpop.f32.mrb[0].mxu0
    %v608 = vadd.f32 %v480, %v607
    %v609 = vpop.f32.mrb[0].mxu0
    %610 = vmatprep.mubr.f32.mxu0 0.0
    %611 = vmatmul.mubr.f32.gmra.mrb[0].mxu0 %v519
    %v612 = vpop.f32.mrb[0].mxu0
    %v613 = vadd.f32 %v485, %v612
    %v614 = vpop.f32.mrb[0].mxu0
    %615 = vmatprep.mubr.f32.mxu0 0.0
    %616 = vmatmul.mubr.f32.gmra.mrb[0].mxu0 %v522
    %v617 = vpop.f32.mrb[0].mxu0
    %v618 = vadd.f32 %v490, %v617
    %v619 = vpop.f32.mrb[0].mxu0
    %620 = vmatprep.mubr.f32.mxu0 0.0
    %621 = vmatmul.mubr.f32.gmra.mrb[0].mxu0 %v525
    %v622 = vpop.f32.mrb[0].mxu0
    %v623 = vadd.f32 %v495, %v622
    %v624 = vpop.f32.mrb[0].mxu0
    %625 = vmatprep.mubr.f32.mxu0 0.0
    %626 = vmatmul.mubr.f32.gmra.mrb[0].mxu0 %v528
    %v627 = vpop.f32.mrb[0].mxu0
    %v628 = vadd.f32 %v500, %v627
    %v629 = vpop.f32.mrb[0].mxu0
    %630 = vmatprep.mubr.f32.mxu0 0.0
    %631 = vmatmul.mubr.f32.gmra.mrb[0].mxu0 %v531
    %v632 = vpop.f32.mrb[0].mxu0
    %v633 = vadd.f32 %v505, %v632
    %v634 = vpop.f32.mrb[0].mxu0
    %635 = vmatprep.mubr.f32.mxu0 0.0
    %636 = vmatmul.mubr.f32.gmra.mrb[0].mxu0 %v534
    %v637 = vpop.f32.mrb[0].mxu0
    %v638 = vadd.f32 %v510, %v637
    %v639 = vpop.f32.mrb[0].mxu0
    %640 = vdwg.mxu0
    %v641 = vmul.f32 %v603, 0.2
    %v642 = vmul.f32 %v608, 0.2
    %v643 = vmul.f32 %v613, 0.2
    %v644 = vmul.f32 %v618, 0.2
    %v645 = vmul.f32 %v623, 0.2
    %v646 = vmul.f32 %v628, 0.2
    %v647 = vmul.f32 %v633, 0.2
    %v648 = vmul.f32 %v638, 0.2
    %v649 = vmax.f32 %v603, %v641
    %v650 = vmax.f32 %v608, %v642
    %v651 = vmax.f32 %v613, %v643
    %v652 = vmax.f32 %v618, %v644
    %v653 = vmax.f32 %v623, %v645
    %v654 = vmax.f32 %v628, %v646
    %v655 = vmax.f32 %v633, %v647
    %v656 = vmax.f32 %v638, %v648
    %v657 = vld [vmem:[%s5] sm:$0xff]
    %v658 = vld [vmem:[%s5 + $0x8] sm:$0xff]
    %v659 = vld [vmem:[%s5 + $0x10] sm:$0xff]
    %v660 = vld [vmem:[%s5 + $0x18] sm:$0xff]
    %v661 = vld [vmem:[%s5 + $0x20] sm:$0xff]
    %v662 = vld [vmem:[%s5 + $0x28] sm:$0xff]
    %v663 = vld [vmem:[%s5 + $0x30] sm:$0xff]
    %v664 = vld [vmem:[%s5 + $0x38] sm:$0xff]
    %v665 = vld [vmem:[%s11] sm:$0xff]
    %v666 = vld [vmem:[%s11 + $0x8] sm:$0xff]
    %v667 = vld [vmem:[%s11 + $0x10] sm:$0xff]
    %v668 = vld [vmem:[%s11 + $0x18] sm:$0xff]
    %v669 = vld [vmem:[%s11 + $0x20] sm:$0xff]
    %v670 = vld [vmem:[%s11 + $0x28] sm:$0xff]
    %v671 = vld [vmem:[%s11 + $0x30] sm:$0xff]
    %v672 = vld [vmem:[%s11 + $0x38] sm:$0xff]
    %674 = vset.pattern.permute.xlu0 0
    %675 = vperm.xlu0 %674, %v665
    %v676 = vpop.permute.xlu0 %675
    %679 = vset.pattern.permute.xlu0 0
    %680 = vperm.xlu0 %679, %v666
    %v681 = vpop.permute.xlu0 %680
    %684 = vset.pattern.permute.xlu0 0
    %685 = vperm.xlu0 %684, %v667
    %v686 = vpop.permute.xlu0 %685
    %689 = vset.pattern.permute.xlu0 0
    %690 = vperm.xlu0 %689, %v668
    %v691 = vpop.permute.xlu0 %690
    %694 = vset.pattern.permute.xlu0 0
    %695 = vperm.xlu0 %694, %v669
    %v696 = vpop.permute.xlu0 %695
    %699 = vset.pattern.permute.xlu0 0
    %700 = vperm.xlu0 %699, %v670
    %v701 = vpop.permute.xlu0 %700
    %704 = vset.pattern.permute.xlu0 0
    %705 = vperm.xlu0 %704, %v671
    %v706 = vpop.permute.xlu0 %705
    %709 = vset.pattern.permute.xlu0 0
    %710 = vperm.xlu0 %709, %v672
    %v711 = vpop.permute.xlu0 %710
    %v714 = vsel %vm310, %v657, 0
    %v717 = vsel %vm310, %v658, 0
    %v720 = vsel %vm310, %v659, 0
    %v723 = vsel %vm310, %v660, 0
    %v726 = vsel %vm310, %v661, 0
    %v729 = vsel %vm310, %v662, 0
    %v732 = vsel %vm310, %v663, 0
    %v735 = vsel %vm310, %v664, 0
    %737 = vmatprep.subr.mxu0 0.0
    %738 = vmatpush1.msra.mxu0 %v649
    %739 = vmatprep.subr.mxu0 0.0
    %740 = vmatpush1.msra.mxu0 %v650
    %741 = vmatprep.subr.mxu0 0.0
    %742 = vmatpush1.msra.mxu0 %v651
    %743 = vmatprep.subr.mxu0 0.0
    %744 = vmatpush1.msra.mxu0 %v652
    %745 = vmatprep.subr.mxu0 0.0
    %746 = vmatpush1.msra.mxu0 %v653
    %747 = vmatprep.subr.mxu0 0.0
    %748 = vmatpush1.msra.mxu0 %v654
    %749 = vmatprep.subr.mxu0 0.0
    %750 = vmatpush1.msra.mxu0 %v655
    %751 = vmatprep.subr.mxu0 0.0
    %752 = vmatpush1.msra.mxu0 %v656
    %753 = vmatprep.subr.mxu0 0.0
    %754 = vmatpush1.msra.mxu0 0.0
    %755 = vmatprep.subr.mxu0 0.0
    %756 = vmatpush1.msra.mxu0 0.0
    %757 = vmatprep.subr.mxu0 0.0
    %758 = vmatpush1.msra.mxu0 0.0
    %759 = vmatprep.subr.mxu0 0.0
    %760 = vmatpush1.msra.mxu0 0.0
    %761 = vmatprep.subr.mxu0 0.0
    %762 = vmatpush1.msra.mxu0 0.0
    %763 = vmatprep.subr.mxu0 0.0
    %764 = vmatpush1.msra.mxu0 0.0
    %765 = vmatprep.subr.mxu0 0.0
    %766 = vmatpush1.msra.mxu0 0.0
    %767 = vmatprep.subr.mxu0 0.0
    %768 = vmatpush1.msra.mxu0 0.0
    %769 = vmatprep.subr.mxu0 0.0
    %770 = vmatpush1.msra.mxu0 0.0
    %771 = vmatprep.subr.mxu0 0.0
    %772 = vmatpush1.msra.mxu0 0.0
    %773 = vmatprep.subr.mxu0 0.0
    %774 = vmatpush1.msra.mxu0 0.0
    %775 = vmatprep.subr.mxu0 0.0
    %776 = vmatpush1.msra.mxu0 0.0
    %777 = vmatprep.subr.mxu0 0.0
    %778 = vmatpush1.msra.mxu0 0.0
    %779 = vmatprep.subr.mxu0 0.0
    %780 = vmatpush1.msra.mxu0 0.0
    %781 = vmatprep.subr.mxu0 0.0
    %782 = vmatpush1.msra.mxu0 0.0
    %783 = vmatprep.subr.mxu0 0.0
    %784 = vmatpush1.msra.mxu0 0.0
    %785 = vmatprep.subr.mxu0 0.0
    %786 = vmatpush1.msra.mxu0 0.0
    %787 = vmatprep.subr.mxu0 0.0
    %788 = vmatpush1.msra.mxu0 0.0
    %789 = vmatprep.subr.mxu0 0.0
    %790 = vmatpush1.msra.mxu0 0.0
    %791 = vmatprep.subr.mxu0 0.0
    %792 = vmatpush1.msra.mxu0 0.0
    %793 = vmatprep.subr.mxu0 0.0
    %794 = vmatpush1.msra.mxu0 0.0
    %795 = vmatprep.subr.mxu0 0.0
    %796 = vmatpush1.msra.mxu0 0.0
    %797 = vmatprep.subr.mxu0 0.0
    %798 = vmatpush1.msra.mxu0 0.0
    %799 = vmatprep.subr.mxu0 0.0
    %800 = vmatpush1.msra.mxu0 0.0
    %801 = vmatprep.mubr.f32.mxu0 0.0
    %802 = vmatmul.mubr.f32.gmra.mrb[0].mxu0 %v714
    %v803 = vpop.f32.mrb[0].mxu0
    %v804 = vadd.f32 %v676, %v803
    %v805 = vpop.f32.mrb[0].mxu0
    %806 = vmatprep.mubr.f32.mxu0 0.0
    %807 = vmatmul.mubr.f32.gmra.mrb[0].mxu0 %v717
    %v808 = vpop.f32.mrb[0].mxu0
    %v809 = vadd.f32 %v681, %v808
    %v810 = vpop.f32.mrb[0].mxu0
    %811 = vmatprep.mubr.f32.mxu0 0.0
    %812 = vmatmul.mubr.f32.gmra.mrb[0].mxu0 %v720
    %v813 = vpop.f32.mrb[0].mxu0
    %v814 = vadd.f32 %v686, %v813
    %v815 = vpop.f32.mrb[0].mxu0
    %816 = vmatprep.mubr.f32.mxu0 0.0
    %817 = vmatmul.mubr.f32.gmra.mrb[0].mxu0 %v723
    %v818 = vpop.f32.mrb[0].mxu0
    %v819 = vadd.f32 %v691, %v818
    %v820 = vpop.f32.mrb[0].mxu0
    %821 = vmatprep.mubr.f32.mxu0 0.0
    %822 = vmatmul.mubr.f32.gmra.mrb[0].mxu0 %v726
    %v823 = vpop.f32.mrb[0].mxu0
    %v824 = vadd.f32 %v696, %v823
    %v825 = vpop.f32.mrb[0].mxu0
    %826 = vmatprep.mubr.f32.mxu0 0.0
    %827 = vmatmul.mubr.f32.gmra.mrb[0].mxu0 %v729
    %v828 = vpop.f32.mrb[0].mxu0
    %v829 = vadd.f32 %v701, %v828
    %v830 = vpop.f32.mrb[0].mxu0
    %831 = vmatprep.mubr.f32.mxu0 0.0
    %832 = vmatmul.mubr.f32.gmra.mrb[0].mxu0 %v732
    %v833 = vpop.f32.mrb[0].mxu0
    %v834 = vadd.f32 %v706, %v833
    %v835 = vpop.f32.mrb[0].mxu0
    %836 = vmatprep.mubr.f32.mxu0 0.0
    %837 = vmatmul.mubr.f32.gmra.mrb[0].mxu0 %v735
    %v838 = vpop.f32.mrb[0].mxu0
    %v839 = vadd.f32 %v711, %v838
    %v840 = vpop.f32.mrb[0].mxu0
    %841 = vdwg.mxu0
    %v842 = vmul.f32 %v804, 0.2
    %v843 = vmul.f32 %v809, 0.2
    %v844 = vmul.f32 %v814, 0.2
    %v845 = vmul.f32 %v819, 0.2
    %v846 = vmul.f32 %v824, 0.2
    %v847 = vmul.f32 %v829, 0.2
    %v848 = vmul.f32 %v834, 0.2
    %v849 = vmul.f32 %v839, 0.2
    %v850 = vmax.f32 %v804, %v842
    %v851 = vmax.f32 %v809, %v843
    %v852 = vmax.f32 %v814, %v844
    %v853 = vmax.f32 %v819, %v845
    %v854 = vmax.f32 %v824, %v846
    %v855 = vmax.f32 %v829, %v847
    %v856 = vmax.f32 %v834, %v848
    %v857 = vmax.f32 %v839, %v849
    %v858 = vld [vmem:[%s6] sm:$0xff]
    %v859 = vld [vmem:[%s6 + $0x8] sm:$0xff]
    %v860 = vld [vmem:[%s6 + $0x10] sm:$0xff]
    %v861 = vld [vmem:[%s6 + $0x18] sm:$0xff]
    %v862 = vld [vmem:[%s6 + $0x20] sm:$0xff]
    %v863 = vld [vmem:[%s6 + $0x28] sm:$0xff]
    %v864 = vld [vmem:[%s6 + $0x30] sm:$0xff]
    %v865 = vld [vmem:[%s6 + $0x38] sm:$0xff]
    %v866 = vld [vmem:[%s12] sm:$0xff]
    %v867 = vld [vmem:[%s12 + $0x8] sm:$0xff]
    %v868 = vld [vmem:[%s12 + $0x10] sm:$0xff]
    %v869 = vld [vmem:[%s12 + $0x18] sm:$0xff]
    %v870 = vld [vmem:[%s12 + $0x20] sm:$0xff]
    %v871 = vld [vmem:[%s12 + $0x28] sm:$0xff]
    %v872 = vld [vmem:[%s12 + $0x30] sm:$0xff]
    %v873 = vld [vmem:[%s12 + $0x38] sm:$0xff]
    %875 = vset.pattern.permute.xlu0 0
    %876 = vperm.xlu0 %875, %v866
    %v877 = vpop.permute.xlu0 %876
    %880 = vset.pattern.permute.xlu0 0
    %881 = vperm.xlu0 %880, %v867
    %v882 = vpop.permute.xlu0 %881
    %885 = vset.pattern.permute.xlu0 0
    %886 = vperm.xlu0 %885, %v868
    %v887 = vpop.permute.xlu0 %886
    %890 = vset.pattern.permute.xlu0 0
    %891 = vperm.xlu0 %890, %v869
    %v892 = vpop.permute.xlu0 %891
    %895 = vset.pattern.permute.xlu0 0
    %896 = vperm.xlu0 %895, %v870
    %v897 = vpop.permute.xlu0 %896
    %900 = vset.pattern.permute.xlu0 0
    %901 = vperm.xlu0 %900, %v871
    %v902 = vpop.permute.xlu0 %901
    %905 = vset.pattern.permute.xlu0 0
    %906 = vperm.xlu0 %905, %v872
    %v907 = vpop.permute.xlu0 %906
    %910 = vset.pattern.permute.xlu0 0
    %911 = vperm.xlu0 %910, %v873
    %v912 = vpop.permute.xlu0 %911
    %v915 = vsel %vm310, %v858, 0
    %v918 = vsel %vm310, %v859, 0
    %v921 = vsel %vm310, %v860, 0
    %v924 = vsel %vm310, %v861, 0
    %v927 = vsel %vm310, %v862, 0
    %v930 = vsel %vm310, %v863, 0
    %v933 = vsel %vm310, %v864, 0
    %v936 = vsel %vm310, %v865, 0
    %938 = vmatprep.subr.mxu0 0.0
    %939 = vmatpush1.msra.mxu0 %v850
    %940 = vmatprep.subr.mxu0 0.0
    %941 = vmatpush1.msra.mxu0 %v851
    %942 = vmatprep.subr.mxu0 0.0
    %943 = vmatpush1.msra.mxu0 %v852
    %944 = vmatprep.subr.mxu0 0.0
    %945 = vmatpush1.msra.mxu0 %v853
    %946 = vmatprep.subr.mxu0 0.0
    %947 = vmatpush1.msra.mxu0 %v854
    %948 = vmatprep.subr.mxu0 0.0
    %949 = vmatpush1.msra.mxu0 %v855
    %950 = vmatprep.subr.mxu0 0.0
    %951 = vmatpush1.msra.mxu0 %v856
    %952 = vmatprep.subr.mxu0 0.0
    %953 = vmatpush1.msra.mxu0 %v857
    %954 = vmatprep.subr.mxu0 0.0
    %955 = vmatpush1.msra.mxu0 0.0
    %956 = vmatprep.subr.mxu0 0.0
    %957 = vmatpush1.msra.mxu0 0.0
    %958 = vmatprep.subr.mxu0 0.0
    %959 = vmatpush1.msra.mxu0 0.0
    %960 = vmatprep.subr.mxu0 0.0
    %961 = vmatpush1.msra.mxu0 0.0
    %962 = vmatprep.subr.mxu0 0.0
    %963 = vmatpush1.msra.mxu0 0.0
    %964 = vmatprep.subr.mxu0 0.0
    %965 = vmatpush1.msra.mxu0 0.0
    %966 = vmatprep.subr.mxu0 0.0
    %967 = vmatpush1.msra.mxu0 0.0
    %968 = vmatprep.subr.mxu0 0.0
    %969 = vmatpush1.msra.mxu0 0.0
    %970 = vmatprep.subr.mxu0 0.0
    %971 = vmatpush1.msra.mxu0 0.0
    %972 = vmatprep.subr.mxu0 0.0
    %973 = vmatpush1.msra.mxu0 0.0
    %974 = vmatprep.subr.mxu0 0.0
    %975 = vmatpush1.msra.mxu0 0.0
    %976 = vmatprep.subr.mxu0 0.0
    %977 = vmatpush1.msra.mxu0 0.0
    %978 = vmatprep.subr.mxu0 0.0
    %979 = vmatpush1.msra.mxu0 0.0
    %980 = vmatprep.subr.mxu0 0.0
    %981 = vmatpush1.msra.mxu0 0.0
    %982 = vmatprep.subr.mxu0 0.0
    %983 = vmatpush1.msra.mxu0 0.0
    %984 = vmatprep.subr.mxu0 0.0
    %985 = vmatpush1.msra.mxu0 0.0
    %986 = vmatprep.subr.mxu0 0.0
    %987 = vmatpush1.msra.mxu0 0.0
    %988 = vmatprep.subr.mxu0 0.0
    %989 = vmatpush1.msra.mxu0 0.0
    %990 = vmatprep.subr.mxu0 0.0
    %991 = vmatpush1.msra.mxu0 0.0
    %992 = vmatprep.subr.mxu0 0.0
    %993 = vmatpush1.msra.mxu0 0.0
    %994 = vmatprep.subr.mxu0 0.0
    %995 = vmatpush1.msra.mxu0 0.0
    %996 = vmatprep.subr.mxu0 0.0
    %997 = vmatpush1.msra.mxu0 0.0
    %998 = vmatprep.subr.mxu0 0.0
    %999 = vmatpush1.msra.mxu0 0.0
    %1000 = vmatprep.subr.mxu0 0.0
    %1001 = vmatpush1.msra.mxu0 0.0
    %1002 = vmatprep.mubr.f32.mxu0 0.0
    %1003 = vmatmul.mubr.f32.gmra.mrb[0].mxu0 %v915
    %v1004 = vpop.f32.mrb[0].mxu0
    %v1005 = vadd.f32 %v877, %v1004
    %v1006 = vpop.f32.mrb[0].mxu0
    %1007 = vmatprep.mubr.f32.mxu0 0.0
    %1008 = vmatmul.mubr.f32.gmra.mrb[0].mxu0 %v918
    %v1009 = vpop.f32.mrb[0].mxu0
    %v1010 = vadd.f32 %v882, %v1009
    %v1011 = vpop.f32.mrb[0].mxu0
    %1012 = vmatprep.mubr.f32.mxu0 0.0
    %1013 = vmatmul.mubr.f32.gmra.mrb[0].mxu0 %v921
    %v1014 = vpop.f32.mrb[0].mxu0
    %v1015 = vadd.f32 %v887, %v1014
    %v1016 = vpop.f32.mrb[0].mxu0
    %1017 = vmatprep.mubr.f32.mxu0 0.0
    %1018 = vmatmul.mubr.f32.gmra.mrb[0].mxu0 %v924
    %v1019 = vpop.f32.mrb[0].mxu0
    %v1020 = vadd.f32 %v892, %v1019
    %v1021 = vpop.f32.mrb[0].mxu0
    %1022 = vmatprep.mubr.f32.mxu0 0.0
    %1023 = vmatmul.mubr.f32.gmra.mrb[0].mxu0 %v927
    %v1024 = vpop.f32.mrb[0].mxu0
    %v1025 = vadd.f32 %v897, %v1024
    %v1026 = vpop.f32.mrb[0].mxu0
    %1027 = vmatprep.mubr.f32.mxu0 0.0
    %1028 = vmatmul.mubr.f32.gmra.mrb[0].mxu0 %v930
    %v1029 = vpop.f32.mrb[0].mxu0
    %v1030 = vadd.f32 %v902, %v1029
    %v1031 = vpop.f32.mrb[0].mxu0
    %1032 = vmatprep.mubr.f32.mxu0 0.0
    %1033 = vmatmul.mubr.f32.gmra.mrb[0].mxu0 %v933
    %v1034 = vpop.f32.mrb[0].mxu0
    %v1035 = vadd.f32 %v907, %v1034
    %v1036 = vpop.f32.mrb[0].mxu0
    %1037 = vmatprep.mubr.f32.mxu0 0.0
    %1038 = vmatmul.mubr.f32.gmra.mrb[0].mxu0 %v936
    %v1039 = vpop.f32.mrb[0].mxu0
    %v1040 = vadd.f32 %v912, %v1039
    %v1041 = vpop.f32.mrb[0].mxu0
    %1042 = vdwg.mxu0
    %v1043 = vmul.f32 %v1005, 0.2
    %v1044 = vmul.f32 %v1010, 0.2
    %v1045 = vmul.f32 %v1015, 0.2
    %v1046 = vmul.f32 %v1020, 0.2
    %v1047 = vmul.f32 %v1025, 0.2
    %v1048 = vmul.f32 %v1030, 0.2
    %v1049 = vmul.f32 %v1035, 0.2
    %v1050 = vmul.f32 %v1040, 0.2
    %v1051 = vmax.f32 %v1005, %v1043
    %v1052 = vmax.f32 %v1010, %v1044
    %v1053 = vmax.f32 %v1015, %v1045
    %v1054 = vmax.f32 %v1020, %v1046
    %v1055 = vmax.f32 %v1025, %v1047
    %v1056 = vmax.f32 %v1030, %v1048
    %v1057 = vmax.f32 %v1035, %v1049
    %v1058 = vmax.f32 %v1040, %v1050
    %v1059 = vld [vmem:[%s7] sm:$0xff]
    %v1060 = vld [vmem:[%s7 + $0x8] sm:$0xff]
    %v1061 = vld [vmem:[%s13] sm:$0xff]
    %v1062 = vld [vmem:[%s13 + $0x8] sm:$0xff]
    %1064 = vset.pattern.permute.xlu0 0
    %1065 = vperm.xlu0 %1064, %v1061
    %v1066 = vpop.permute.xlu0 %1065
    %1069 = vset.pattern.permute.xlu0 0
    %1070 = vperm.xlu0 %1069, %v1062
    %v1071 = vpop.permute.xlu0 %1070
    %v1074 = vsel %vm310, %v1059, 0
    %v1077 = vsel %vm310, %v1060, 0
    %1079 = vmatprep.subr.mxu0 0.0
    %1080 = vmatpush1.msra.mxu0 %v1051
    %1081 = vmatprep.subr.mxu0 0.0
    %1082 = vmatpush1.msra.mxu0 %v1052
    %1083 = vmatprep.subr.mxu0 0.0
    %1084 = vmatpush1.msra.mxu0 %v1053
    %1085 = vmatprep.subr.mxu0 0.0
    %1086 = vmatpush1.msra.mxu0 %v1054
    %1087 = vmatprep.subr.mxu0 0.0
    %1088 = vmatpush1.msra.mxu0 %v1055
    %1089 = vmatprep.subr.mxu0 0.0
    %1090 = vmatpush1.msra.mxu0 %v1056
    %1091 = vmatprep.subr.mxu0 0.0
    %1092 = vmatpush1.msra.mxu0 %v1057
    %1093 = vmatprep.subr.mxu0 0.0
    %1094 = vmatpush1.msra.mxu0 %v1058
    %1095 = vmatprep.subr.mxu0 0.0
    %1096 = vmatpush1.msra.mxu0 0.0
    %1097 = vmatprep.subr.mxu0 0.0
    %1098 = vmatpush1.msra.mxu0 0.0
    %1099 = vmatprep.subr.mxu0 0.0
    %1100 = vmatpush1.msra.mxu0 0.0
    %1101 = vmatprep.subr.mxu0 0.0
    %1102 = vmatpush1.msra.mxu0 0.0
    %1103 = vmatprep.subr.mxu0 0.0
    %1104 = vmatpush1.msra.mxu0 0.0
    %1105 = vmatprep.subr.mxu0 0.0
    %1106 = vmatpush1.msra.mxu0 0.0
    %1107 = vmatprep.subr.mxu0 0.0
    %1108 = vmatpush1.msra.mxu0 0.0
    %1109 = vmatprep.subr.mxu0 0.0
    %1110 = vmatpush1.msra.mxu0 0.0
    %1111 = vmatprep.subr.mxu0 0.0
    %1112 = vmatpush1.msra.mxu0 0.0
    %1113 = vmatprep.subr.mxu0 0.0
    %1114 = vmatpush1.msra.mxu0 0.0
    %1115 = vmatprep.subr.mxu0 0.0
    %1116 = vmatpush1.msra.mxu0 0.0
    %1117 = vmatprep.subr.mxu0 0.0
    %1118 = vmatpush1.msra.mxu0 0.0
    %1119 = vmatprep.subr.mxu0 0.0
    %1120 = vmatpush1.msra.mxu0 0.0
    %1121 = vmatprep.subr.mxu0 0.0
    %1122 = vmatpush1.msra.mxu0 0.0
    %1123 = vmatprep.subr.mxu0 0.0
    %1124 = vmatpush1.msra.mxu0 0.0
    %1125 = vmatprep.subr.mxu0 0.0
    %1126 = vmatpush1.msra.mxu0 0.0
    %1127 = vmatprep.subr.mxu0 0.0
    %1128 = vmatpush1.msra.mxu0 0.0
    %1129 = vmatprep.subr.mxu0 0.0
    %1130 = vmatpush1.msra.mxu0 0.0
    %1131 = vmatprep.subr.mxu0 0.0
    %1132 = vmatpush1.msra.mxu0 0.0
    %1133 = vmatprep.subr.mxu0 0.0
    %1134 = vmatpush1.msra.mxu0 0.0
    %1135 = vmatprep.subr.mxu0 0.0
    %1136 = vmatpush1.msra.mxu0 0.0
    %1137 = vmatprep.subr.mxu0 0.0
    %1138 = vmatpush1.msra.mxu0 0.0
    %1139 = vmatprep.subr.mxu0 0.0
    %1140 = vmatpush1.msra.mxu0 0.0
    %1141 = vmatprep.subr.mxu0 0.0
    %1142 = vmatpush1.msra.mxu0 0.0
    %1143 = vmatprep.mubr.f32.mxu0 0.0
    %1144 = vmatmul.mubr.f32.gmra.mrb[0].mxu0 %v1074
    %v1145 = vpop.f32.mrb[0].mxu0
    %v1146 = vadd.f32 %v1066, %v1145
    %v1147 = vpop.f32.mrb[0].mxu0
    %1148 = vmatprep.mubr.f32.mxu0 0.0
    %1149 = vmatmul.mubr.f32.gmra.mrb[0].mxu0 %v1077
    %v1150 = vpop.f32.mrb[0].mxu0
    %v1151 = vadd.f32 %v1071, %v1150
    %v1152 = vpop.f32.mrb[0].mxu0
    %1153 = vdwg.mxu0
    %v1154 = vmul.f32 %v1146, 1.442695
    %v1155 = vpow.pop %v1154
    %v1156 = vmul.f32 %v1155, %v51
    %v1157 = vadd.f32 %v1156, %v1151
    %vm1158 = vcmask 15360
    %1159 = vst.msk [vmem:[%s14] sm:$0xff] %vm1158, %v50
    %1160 = vst.msk [vmem:[%s14 + $0x8] sm:$0xff] %vm1158, %v1157
    %v1161 = vsel %vm1158, %v1146, 0.0
    %v1162 = vrot.slane %v1161, 4
    %v1163 = vadd.f32 %v1161, %v1162
    %v1164 = vrot.slane %v1163, 2
    %v1165 = vadd.f32 %v1163, %v1164
    %v1166 = vrot.slane %v1165, 1
    %v1167 = vadd.f32 %v1165, %v1166
    %vm1168 = vcmask 8192
    %1169 = vst.msk [vmem:[#allocation2] sm:$0x1] %vm1168, %v1167
    // Predicated region
    $region58: #{tpu_custom_call.1} parent=1 // pred_check
      _
    $region59: #{tpu_custom_call.1} parent=1 // pred_check_branch
      %1171 = sbr.rel (0) target = $region61
    $region60: #{tpu_custom_call.1} parent=1 // pred_region
      _
    $region61: #{tpu_custom_call.1} parent=1 // pred_fallthru
      _
    // Predicated region
    $region62: #{tpu_custom_call.1} parent=1 // pred_check
      _
    $region63: #{tpu_custom_call.1} parent=1 // pred_check_branch
      %1173 = sbr.rel (0) target = $region65
    $region64: #{tpu_custom_call.1} parent=1 // pred_region
      %s1175 = ssub.s32 16, 16
      %1176 = vsyncadd [#allocation3], %s1175
      %s1178 = sshll.u32 [#allocation2], 4
      %s1179 = int_to_ptr.vmem [resolvable:$true] %s1178
      %1181 = dma.vmem_to_hbm [thread:$0]  %s1179, 16, %s15, [#allocation3]
    $region65: #{tpu_custom_call.1} parent=1 // pred_fallthru
      _
    // Predicated region
    $region66: #{tpu_custom_call.1} parent=1 // pred_check
      _
    $region67: #{tpu_custom_call.1} parent=1 // pred_check_branch
      %1183 = sbr.rel (0) target = $region69
    $region68: #{tpu_custom_call.1} parent=1 // pred_region
      _
    $region69: #{tpu_custom_call.1} parent=1 // pred_fallthru
      _
    // Predicated region
    $region70: #{tpu_custom_call.1} parent=1 // pred_check
      _
    $region71: #{tpu_custom_call.1} parent=1 // pred_check_branch
      %1185 = sbr.rel (0) target = $region73
    $region72: #{tpu_custom_call.1} parent=1 // pred_region
      %1186 = dma.done [#allocation3], 16
    $region73: #{tpu_custom_call.1} parent=1 // pred_fallthru
      _
    %1187 = vsyncpa [#allocation3], 1

</llo_original>
